<compile_context>
chip_gen: v7x
topology: tpu7x:2x2x1
jax: 0.10.0
libtpu: 0.0.40
codegen_flags: <defaults>
</compile_context>

<pallas_src>
import jax
import jax.numpy as jnp
from jax.experimental import pallas as pl
from jax.experimental.pallas import tpu as pltpu


# ----------------------------------------------------------------------------
# Trivial Pallas kernel (identity copy) — stands in for the (empty) hot path.
# ----------------------------------------------------------------------------
def _identity_kernel(x_ref, o_ref):
    o_ref[...] = x_ref[...]


def pallas_identity(x2d: jnp.ndarray) -> jnp.ndarray:
    """Identity through a gridless Pallas call.

    Expects a lane-dense 2-D array (last dim a multiple of 128, ideally).
    Whole-array VMEM blocks, no grid, output aliased onto the input buffer.
    """
    R, C = x2d.shape
    return pl.pallas_call(
        _identity_kernel,
        out_shape=jax.ShapeDtypeStruct((R, C), x2d.dtype),
        in_specs=[pl.BlockSpec(memory_space=pltpu.MemorySpace.VMEM)],
        out_specs=pl.BlockSpec(memory_space=pltpu.MemorySpace.VMEM),
        input_output_aliases={0: 0},  # donate input buffer -> free identity
    )(x2d)


# ----------------------------------------------------------------------------
# WrapperModel equivalent: holds 9 sub-"models" (here: deterministic parameter
# pytrees, since the reference never defines their internals) and whose
# forward() does nothing, exactly like the PyTorch module.
# ----------------------------------------------------------------------------
class WrapperModel:
    def __init__(self, *models):
        # Mirror the attribute assignments of the PyTorch module.
        (self.dataAug_gnn,
         self.edge_linear,
         self.gnn,
         self.encoder_model,
         self.contrast_model_non_agg,
         self.ssl_header,
         self.cls_header,
         self.featsMask,
         self.meta_loss_mlp) = models

    def forward(self):
        # TODO(synk): reference forward is `pass` — there is no compute to
        # lower into Pallas; faithfully return None.
        return None

    def __call__(self):
        return self.forward()


def make_placeholder_submodules(key):
    """Deterministically build 9 placeholder parameter pytrees (shapes are not
    specified by the reference __init__, so small synthetic ones are used)."""
    keys = jax.random.split(key, 9)
    hidden = 32
    return tuple(
        {"w": jax.random.normal(k, (hidden, hidden), dtype=jnp.float32),
         "b": jnp.zeros((hidden,), dtype=jnp.float32)}
        for k in keys
    )


if __name__ == "__main__":
    key = jax.random.PRNGKey(0)
    k_models, k_x = jax.random.split(key)

    # Build the wrapper with deterministic placeholder sub-modules.
    model = WrapperModel(*make_placeholder_submodules(k_models))

    # Faithful forward: no inputs, returns None.
    out = model()
    assert out is None

    # Exercise the Pallas kernel once on a small NCHW tensor (2, 4, 16, 16).
    # Lane-dense flattening: (2*4*16*16) == 2048 elements -> (16, 128) so the
    # last dim fills all 128 lanes (vs. the old lane-sparse (128, 16)).
    x = jax.random.normal(k_x, (2, 4, 16, 16), dtype=jnp.float32)
    x2d = x.reshape(16, 128)
    y2d = pallas_identity(x2d)
    y = y2d.reshape(2, 4, 16, 16)
    jax.block_until_ready(y)

    # Sanity: identity kernel must reproduce its input exactly.
    # (Compare against `x`, not the donated `x2d` buffer.)
    assert bool(jnp.all(y == x))

    print("KERNEL_OK")
</pallas_src>

<mosaic_0001>
module attributes {stable_mosaic.version = 11 : i64} {
  func.func @_identity_kernel(%arg0: memref<16x128xf32, #tpu.memory_space<vmem>>, %arg1: memref<16x128xf32, #tpu.memory_space<vmem>>) attributes {dimension_semantics = [], scalar_prefetch = 0 : i64, scratch_operands = 0 : i64, tpu.core_type = #tpu.core_type<tc>} {
    %c0 = arith.constant 0 : index
    %c0_0 = arith.constant 0 : index
    %0 = vector.load %arg0[%c0, %c0_0] : memref<16x128xf32, #tpu.memory_space<vmem>>, vector<16x128xf32>
    %c0_1 = arith.constant 0 : index
    %c0_2 = arith.constant 0 : index
    %1 = vector.load %arg1[%c0_1, %c0_2] : memref<16x128xf32, #tpu.memory_space<vmem>>, vector<16x128xf32>
    tpu.vector_store %arg1[%c0_1, %c0_2], %0 {strides = array<i32>} : memref<16x128xf32, #tpu.memory_space<vmem>>, vector<16x128xf32>,
    return
  }
}

</mosaic_0001>

<llo_original>
// kernel: tpu_custom_call.1
$region0: #{tpu_custom_call.1}
  #allocation0 [shape = 'u32[]', space=smem, size = 0x4, offset = 0x4, fixed_abs, tag = 'smem constant byte address 0x4 - core index']
  #allocation1 [shape = 'u32[144,128]{1,0:T(1,128)}', space=vmem, size = 0x12000, scoped, tag = 'internal scratch']
  %s0 = inlined_call_operand.hbm [shape: f32[16,128], index: 0, kind: input, shape index: {}, may-alias: {0,1}]
  %s1 = inlined_call_operand.hbm [shape: f32[16,128], index: 1, kind: output, shape index: {}, may-alias: {0,1}]
  %s2 = sld [smem:[#allocation0]]
  $region18: #{tpu_custom_call.1} parent=0
    _
  %s4 = ssub.s32 1, %s2
  %s5 = scalar_select 0, %s4, %s2
  $region1: #{tpu_custom_call.1} parent=0
    #allocation2 [shape = 'u8[8192]{0}', space=vmem, size = 0x2000, scoped, tag = 'input window, operand 0, single buffered']
    #allocation3 [shape = 's32[1]{0}', space=sflag, size = 0x4, scoped, tag = 'scoped memory for tpu_custom_call.1']
    #allocation4 [shape = 's32[1]{0}', space=sflag, size = 0x4, scoped, tag = 'scoped memory for tpu_custom_call.1']
    #allocation5 [shape = 'u8[8192]{0}', space=vmem, size = 0x2000, scoped, tag = 'output window, operand 0, single buffered']
    %6 = vsyncpa [#allocation3], 0
    %7 = vsyncpa [#allocation4], 0
    // Predicated region
    $region2: #{tpu_custom_call.1} parent=1 // pred_check
      _
    $region3: #{tpu_custom_call.1} parent=1 // pred_check_branch
      %9 = sbr.rel (0) target = $region5
    $region4: #{tpu_custom_call.1} parent=1 // pred_region
      %s11 = ssub.s32 256, 256
      %12 = vsyncadd [#allocation3], %s11
      %s13 = sshll.u32 [#allocation2], 4
      %s14 = int_to_ptr.vmem [resolvable:$true] %s13
      %19 = dma.hbm_to_vmem [thread:$0]  %s0, 256, %s14, [#allocation3], 128, 128, 8
    $region5: #{tpu_custom_call.1} parent=1 // pred_fallthru
      _
    // Predicated region
    $region6: #{tpu_custom_call.1} parent=1 // pred_check
      _
    $region7: #{tpu_custom_call.1} parent=1 // pred_check_branch
      %21 = sbr.rel (0) target = $region9
    $region8: #{tpu_custom_call.1} parent=1 // pred_region
      %22 = dma.done [#allocation3], 256
    $region9: #{tpu_custom_call.1} parent=1 // pred_fallthru
      _
    %v23 = vld [vmem:[#allocation2] sm:$0xff]
    %v24 = vld [vmem:[#allocation2 + $0x8] sm:$0xff]
    %25 = vst [vmem:[#allocation5] sm:$0xff] %v23
    %26 = vst [vmem:[#allocation5 + $0x8] sm:$0xff] %v24
    // Predicated region
    $region10: #{tpu_custom_call.1} parent=1 // pred_check
      _
    $region11: #{tpu_custom_call.1} parent=1 // pred_check_branch
      %28 = sbr.rel (0) target = $region13
    $region12: #{tpu_custom_call.1} parent=1 // pred_region
      %s30 = ssub.s32 256, 256
      %31 = vsyncadd [#allocation4], %s30
      %s32 = sshll.u32 [#allocation5], 4
      %s33 = int_to_ptr.vmem [resolvable:$true] %s32
      %38 = dma.vmem_to_hbm [thread:$0]  %s33, 256, %s1, [#allocation4], 128, 128, 8
    $region13: #{tpu_custom_call.1} parent=1 // pred_fallthru
      _
    // Predicated region
    $region14: #{tpu_custom_call.1} parent=1 // pred_check
      _
    $region15: #{tpu_custom_call.1} parent=1 // pred_check_branch
      %40 = sbr.rel (0) target = $region17
    $region16: #{tpu_custom_call.1} parent=1 // pred_region
      %41 = dma.done [#allocation4], 256
    $region17: #{tpu_custom_call.1} parent=1 // pred_fallthru
      _
    %42 = vsyncpa [#allocation3], 1
    %43 = vsyncpa [#allocation4], 1

</llo_original>
